<compile_context>
chip_gen: v6e
topology: v6e:2x2x1
jax: 0.10.0
libtpu: 0.0.40
codegen_flags: <defaults>
</compile_context>

<pallas_src>
import math

import jax
import jax.numpy as jnp
import numpy as np
from jax.experimental import pallas as pl
from jax.experimental.pallas import tpu as pltpu

_EPS = 1e-5            # PyTorch BatchNorm2d default eps
_NUM_SUBSET = 3
_VMEM_LIMIT_BYTES = 48 * 1024 * 1024


def _round_up(x, m):
    return -(-x // m) * m


# ----------------------------------------------------------------------------- kernel
def _gcn_gemm_kernel(x_ref, w_ref, b_ref, o_ref):
    """out = ReLU(x @ W + b) on one row tile; W columns are (vertex, channel) packed."""
    y = jnp.dot(x_ref[...], w_ref[...], preferred_element_type=jnp.float32)
    y = y + b_ref[...]
    o_ref[...] = jnp.maximum(y, 0.0).astype(o_ref.dtype)


# ------------------------------------------------------------------------ weight fold
def fold_unit_gcn_params(params, in_channels, num_point):
    """Fold bn0 / bn / adjacency / residual into one (V*Cin, V*Cout) weight + bias."""
    Cin, V, K = in_channels, num_point, _NUM_SUBSET
    W = params["linear_weight"]                       # (Cin, 3*Cout)
    Cout = W.shape[1] // K

    # bn0 folded into the linear transform.
    s0 = params["bn0_gamma"] / jnp.sqrt(params["bn0_var"] + _EPS)
    b0 = params["bn0_beta"] - params["bn0_mean"] * s0
    W_f = (W * s0[None, :]).reshape(Cin, K, Cout)                  # (Cin, K, Cout)
    bias_f = (params["linear_bias"] * s0 + b0).reshape(K, Cout)    # (K, Cout)

    # Normalized decoupled adjacency (column-sum normalization, as in norm()).
    learn_A = jnp.tile(params["decouple_A"], (1, Cout // params["groups"], 1, 1))
    col_sum = jnp.sum(learn_A, axis=2, keepdims=True)
    A_norm = learn_A / (col_sum + 0.001)                           # (K, Cout, V, V)

    # Post-aggregation bn scale/shift.
    s = params["bn_gamma"] / jnp.sqrt(params["bn_var"] + _EPS)
    sh = params["bn_beta"] - params["bn_mean"] * s

    # Main branch: B4[v, cin, w, cout] = s[cout] * sum_k W_f[cin,k,cout]*A_norm[k,cout,v,w]
    B4 = jnp.einsum('ikc,kcvw->viwc', W_f, A_norm) * s[None, None, None, :]
    # Bias of the main branch (depends on target vertex w through the column sums),
    # bn shift folded in here (no separate kernel input).
    bias_main = jnp.einsum('kc,kcvw->wc', bias_f, A_norm) * s[None, :] + sh[None, :]

    # Residual / down path as a block-diagonal weight on the same GEMM.
    if Cin != Cout:
        sd = params["down_bn_gamma"] / jnp.sqrt(params["down_bn_var"] + _EPS)
        bd_sh = params["down_bn_beta"] - params["down_bn_mean"] * sd
        Wres = params["down_w"].T * sd[None, :]                    # (Cin, Cout)
        bias_res = params["down_b"] * sd + bd_sh                   # (Cout,)
    else:
        Wres = jnp.eye(Cin, Cout, dtype=jnp.float32)               # identity residual
        bias_res = jnp.zeros((Cout,), jnp.float32)
    R4 = jnp.einsum('vw,ic->viwc', jnp.eye(V, dtype=jnp.float32), Wres)

    fused_w = (B4 + R4).reshape(V * Cin, V * Cout)
    fused_b = (bias_main + bias_res[None, :]).reshape(1, V * Cout)
    return fused_w, fused_b


# ----------------------------------------------------------------------------- tiling
def _choose_grid_m(M, Kdim, Nout, bytes_x, budget_bytes=16 << 20):
    """Even number of equal-size row tiles (balanced across the 2 v7x TensorCores)."""
    # Per-row working set: x tile (double-buffered) + f32 out tile (double-buffered)
    # + the f32 GEMM result living in vregs/VMEM.
    per_row = bytes_x * Kdim * 2 + 4 * Nout * 3
    target = max(8, min(1024, budget_bytes // max(per_row, 1)))
    if M <= 8:
        return _round_up(max(M, 1), 8), 1
    num = max(2, -(-M // target))
    if num % 2:
        num += 1
    tile_m = _round_up(-(-M // num), 8)
    return int(tile_m), int(num)


# -------------------------------------------------------------------- packed entry pt
def unit_gcn_apply_packed(x_packed, fused_w, fused_b, *,
                          compute_dtype=jnp.float32, out_dtype=jnp.float32):
    """x_packed: (M, V*Cin) channels-last packed rows -> (M, V*Cout)."""
    M, Kdim = x_packed.shape
    Nout = fused_w.shape[1]
    tile_m, num_m = _choose_grid_m(M, Kdim, Nout, jnp.dtype(compute_dtype).itemsize)
    Mp = tile_m * num_m
    if Mp != M:
        x_packed = jnp.pad(x_packed, ((0, Mp - M), (0, 0)))
    x_packed = x_packed.astype(compute_dtype)
    fused_w = fused_w.astype(compute_dtype)
    fused_b = fused_b.astype(jnp.float32)

    out = pl.pallas_call(
        _gcn_gemm_kernel,
        out_shape=jax.ShapeDtypeStruct((Mp, Nout), out_dtype),
        grid=(num_m,),
        in_specs=[
            pl.BlockSpec((tile_m, Kdim), lambda i: (i, 0)),     # x row tile
            pl.BlockSpec((Kdim, Nout), lambda i: (0, 0)),       # fused weight (grid-inv)
            pl.BlockSpec((1, Nout), lambda i: (0, 0)),          # fused bias   (grid-inv)
        ],
        out_specs=pl.BlockSpec((tile_m, Nout), lambda i: (i, 0)),
        compiler_params=pltpu.CompilerParams(
            dimension_semantics=("parallel",),
            vmem_limit_bytes=_VMEM_LIMIT_BYTES),
    )(x_packed, fused_w, fused_b)
    return out[:M] if Mp != M else out


# ---------------------------------------------------------------------------- wrapper
def unit_gcn_forward(x0_nctv, params, *, compute_dtype=jnp.float32,
                     out_dtype=jnp.float32):
    N, Cin, T, V = x0_nctv.shape
    fused_w, fused_b = fold_unit_gcn_params(params, Cin, V)
    Cout = fused_w.shape[1] // V
    # NCTV -> packed channels-last (M, V*Cin).  Multi-layer stacks should keep the
    # packed layout end-to-end (call unit_gcn_apply_packed directly) to avoid these
    # two extra HBM transpose passes.
    x = jnp.transpose(x0_nctv, (0, 2, 3, 1)).reshape(N * T, V * Cin)
    out = unit_gcn_apply_packed(x, fused_w, fused_b,
                                compute_dtype=compute_dtype, out_dtype=out_dtype)
    out = out.reshape(N, T, V, Cout)
    return jnp.transpose(out, (0, 3, 1, 2))                    # back to (N, Cout, T, V)


# ----------------------------------------------------------------- params / reference
def init_params(key, in_channels, out_channels, num_point, groups):
    """Deterministic synthetic init mirroring unit_gcn.__init__ shapes/inits."""
    k_a, k_w, k_d = jax.random.split(key, 3)
    Cout3 = out_channels * _NUM_SUBSET
    A = jax.random.uniform(k_a, (_NUM_SUBSET, num_point, num_point), jnp.float32)
    decouple_A = jnp.tile(A.reshape(_NUM_SUBSET, 1, num_point, num_point),
                          (1, groups, 1, 1))                   # (3, groups, V, V)
    linear_weight = (jax.random.normal(k_w, (in_channels, Cout3), jnp.float32)
                     * math.sqrt(0.5 / Cout3))
    params = dict(
        groups=groups,
        decouple_A=decouple_A,
        linear_weight=linear_weight,
        linear_bias=jnp.full((Cout3,), 1e-6, jnp.float32),
        bn0_gamma=jnp.ones((Cout3,), jnp.float32),
        bn0_beta=jnp.zeros((Cout3,), jnp.float32),
        bn0_mean=jnp.zeros((Cout3,), jnp.float32),
        bn0_var=jnp.ones((Cout3,), jnp.float32),
        bn_gamma=jnp.full((out_channels,), 1e-6, jnp.float32),  # bn_init(self.bn, 1e-6)
        bn_beta=jnp.zeros((out_channels,), jnp.float32),
        bn_mean=jnp.zeros((out_channels,), jnp.float32),
        bn_var=jnp.ones((out_channels,), jnp.float32),
    )
    if in_channels != out_channels:
        fan_out = out_channels * 1 * 1                          # 1x1 conv, kaiming fan_out
        params.update(
            down_w=(jax.random.normal(k_d, (out_channels, in_channels), jnp.float32)
                    * math.sqrt(2.0 / fan_out)),
            down_b=jnp.zeros((out_channels,), jnp.float32),
            down_bn_gamma=jnp.ones((out_channels,), jnp.float32),
            down_bn_beta=jnp.zeros((out_channels,), jnp.float32),
            down_bn_mean=jnp.zeros((out_channels,), jnp.float32),
            down_bn_var=jnp.ones((out_channels,), jnp.float32),
        )
    return params


def ref_forward(x0, params):
    """Pure-JAX reference mirroring the PyTorch forward (inference-mode BN)."""
    N, Cin, T, V = x0.shape
    W = params["linear_weight"]
    Cout = W.shape[1] // _NUM_SUBSET
    learn_A = jnp.tile(params["decouple_A"], (1, Cout // params["groups"], 1, 1))
    col_sum = jnp.sum(learn_A, axis=2, keepdims=True)
    A_norm = learn_A / (col_sum + 0.001)

    x = jnp.einsum('nctw,cd->ndtw', x0, W)
    x = x + params["linear_bias"].reshape(1, -1, 1, 1)
    s0 = params["bn0_gamma"] / jnp.sqrt(params["bn0_var"] + _EPS)
    x = ((x - params["bn0_mean"].reshape(1, -1, 1, 1)) * s0.reshape(1, -1, 1, 1)
         + params["bn0_beta"].reshape(1, -1, 1, 1))
    x = x.reshape(N, _NUM_SUBSET, Cout, T, V)
    x = jnp.einsum('nkctv,kcvw->nctw', x, A_norm)
    s = params["bn_gamma"] / jnp.sqrt(params["bn_var"] + _EPS)
    x = ((x - params["bn_mean"].reshape(1, -1, 1, 1)) * s.reshape(1, -1, 1, 1)
         + params["bn_beta"].reshape(1, -1, 1, 1))
    if Cin != Cout:
        d = (jnp.einsum('nctv,oc->notv', x0, params["down_w"])
             + params["down_b"].reshape(1, -1, 1, 1))
        sd = params["down_bn_gamma"] / jnp.sqrt(params["down_bn_var"] + _EPS)
        d = ((d - params["down_bn_mean"].reshape(1, -1, 1, 1)) * sd.reshape(1, -1, 1, 1)
             + params["down_bn_beta"].reshape(1, -1, 1, 1))
    else:
        d = x0
    return jnp.maximum(x + d, 0.0)


if __name__ == "__main__":
    key = jax.random.PRNGKey(0)
    kx1, kp1, kx2, kp2 = jax.random.split(key, 4)

    # config 1: Cin != Cout -> down path (1x1 conv + BN) fused as block-diag residual
    N, Cin, Cout, T, V, groups = 2, 4, 8, 8, 16, 4
    params1 = init_params(kp1, Cin, Cout, V, groups)
    x0 = jax.random.normal(kx1, (N, Cin, T, V), jnp.float32)
    out1 = jax.block_until_ready(unit_gcn_forward(x0, params1))
    ref1 = ref_forward(x0, params1)
    np.testing.assert_allclose(np.asarray(out1), np.asarray(ref1), rtol=1e-4, atol=1e-4)

    # config 2: Cin == Cout -> identity residual fused into the same GEMM
    params2 = init_params(kp2, Cout, Cout, V, groups)
    x1 = jax.random.normal(kx2, (N, Cout, T, V), jnp.float32)
    out2 = jax.block_until_ready(unit_gcn_forward(x1, params2))
    ref2 = ref_forward(x1, params2)
    np.testing.assert_allclose(np.asarray(out2), np.asarray(ref2), rtol=1e-4, atol=1e-4)

    print("KERNEL_OK")
</pallas_src>

<mosaic_0001>
module attributes {stable_mosaic.version = 11 : i64} {
  func.func @_gcn_gemm_kernel(%arg0: i32, %arg1: memref<8x64xf32, #tpu.memory_space<vmem>>, %arg2: memref<64x128xf32, #tpu.memory_space<vmem>>, %arg3: memref<1x128xf32, #tpu.memory_space<vmem>>, %arg4: memref<8x128xf32, #tpu.memory_space<vmem>>) attributes {dimension_semantics = [#tpu.dimension_semantics<parallel>], iteration_bounds = array<i64: 2>, scalar_prefetch = 0 : i64, scratch_operands = 0 : i64, tpu.core_type = #tpu.core_type<tc>, window_params = [{transform_indices = @transform_0, window_bounds = array<i64: 8, 64>}, {pipeline_mode = #tpu.pipeline_mode<synchronous>, transform_indices = @transform_1, window_bounds = array<i64: 64, 128>}, {pipeline_mode = #tpu.pipeline_mode<synchronous>, transform_indices = @transform_2, window_bounds = array<i64: 1, 128>}, {transform_indices = @transform_3, window_bounds = array<i64: 8, 128>}]} {
    %c0 = arith.constant 0 : index
    %c0_0 = arith.constant 0 : index
    %0 = vector.load %arg1[%c0, %c0_0] : memref<8x64xf32, #tpu.memory_space<vmem>>, vector<8x64xf32>
    %c0_1 = arith.constant 0 : index
    %c0_2 = arith.constant 0 : index
    %1 = vector.load %arg2[%c0_1, %c0_2] : memref<64x128xf32, #tpu.memory_space<vmem>>, vector<64x128xf32>
    %cst = arith.constant dense<0.000000e+00> : vector<8x128xf32>
    %2 = tpu.matmul %0, %1, %cst {dimension_numbers = #tpu.dot_dimension_numbers<[1], [0], [0], [1], [0, 0, 1, 1], [], []>} : vector<8x64xf32>, vector<64x128xf32>, vector<8x128xf32> -> vector<8x128xf32>
    %c0_3 = arith.constant 0 : index
    %c0_4 = arith.constant 0 : index
    %3 = vector.load %arg3[%c0_3, %c0_4] : memref<1x128xf32, #tpu.memory_space<vmem>>, vector<1x128xf32>
    %4 = vector.broadcast %3 : vector<1x128xf32> to vector<8x128xf32>
    %5 = arith.addf %2, %4 : vector<8x128xf32>
    %cst_5 = arith.constant 0.000000e+00 : f32
    %6 = vector.broadcast %cst_5 : f32 to vector<8x128xf32>
    %7 = arith.maximumf %5, %6 : vector<8x128xf32>
    %c0_6 = arith.constant 0 : index
    %c0_7 = arith.constant 0 : index
    %8 = vector.load %arg4[%c0_6, %c0_7] : memref<8x128xf32, #tpu.memory_space<vmem>>, vector<8x128xf32>
    tpu.vector_store %arg4[%c0_6, %c0_7], %7 {strides = array<i32>} : memref<8x128xf32, #tpu.memory_space<vmem>>, vector<8x128xf32>,
    return
  }
  func.func @transform_0(%arg0: i32) -> (i32, i32) {
    %c0_i32 = arith.constant 0 : i32
    %c0_i32_0 = arith.constant 0 : i32
    return %arg0, %c0_i32 : i32, i32
  }
  func.func @transform_1(%arg0: i32) -> (i32, i32) {
    %c0_i32 = arith.constant 0 : i32
    %c0_i32_0 = arith.constant 0 : i32
    %c0_i32_1 = arith.constant 0 : i32
    return %c0_i32, %c0_i32_0 : i32, i32
  }
  func.func @transform_2(%arg0: i32) -> (i32, i32) {
    %c0_i32 = arith.constant 0 : i32
    %c0_i32_0 = arith.constant 0 : i32
    %c0_i32_1 = arith.constant 0 : i32
    return %c0_i32, %c0_i32_0 : i32, i32
  }
  func.func @transform_3(%arg0: i32) -> (i32, i32) {
    %c0_i32 = arith.constant 0 : i32
    %c0_i32_0 = arith.constant 0 : i32
    return %arg0, %c0_i32 : i32, i32
  }
}

</mosaic_0001>

<llo_original>
// kernel: tpu_custom_call.1
$region0: #{tpu_custom_call.1}
  #allocation0 [shape = 'u32[]', space=smem, size = 0x4, offset = 0x4, fixed_abs, tag = 'smem constant byte address 0x4 - core index']
  #allocation1 [shape = 'u32[144,128]{1,0:T(1,128)}', space=vmem, size = 0x12000, scoped, tag = 'internal scratch']
  %s0 = inlined_call_operand.hbm [shape: f32[16,64], index: 0, kind: input, shape index: {}]
  %s1 = inlined_call_operand.hbm [shape: f32[64,128], index: 1, kind: input, shape index: {}]
  %s2 = inlined_call_operand.vmem [shape: f32[1,128], index: 2, kind: input, shape index: {}]
  %s3 = inlined_call_operand.hbm [shape: f32[16,128], index: 3, kind: output, shape index: {}]
  %s4 = sld [smem:[#allocation0]]
  $region53: #{tpu_custom_call.1} parent=0
    _
  %s6 = ssub.s32 1, %s4
  %s7 = scalar_select 0, %s6, %s4
  $region1: #{tpu_custom_call.1} parent=0
    #allocation2 [shape = 'u8[8192]{0}', space=vmem, size = 0x2000, scoped, tag = 'input window, operand 0']
    #allocation3 [shape = 's32[2]{0}', space=sflag, size = 0x8, scoped, tag = 'scoped memory for tpu_custom_call.1']
    #allocation4 [shape = 's32[2]{0}', space=sflag, size = 0x8, scoped, tag = 'scoped memory for tpu_custom_call.1']
    #allocation5 [shape = 'u8[32768]{0}', space=vmem, size = 0x8000, scoped, tag = 'input window, operand 1, single buffered']
    #allocation6 [shape = 's32[1]{0}', space=sflag, size = 0x4, scoped, tag = 'scoped memory for tpu_custom_call.1']
    #allocation7 [shape = 'u8[8192]{0}', space=vmem, size = 0x2000, scoped, tag = 'output window, operand 0']
    %8 = vsyncpa [#allocation3], 0
    %s9 = scalar_lea.sflag [#allocation3], 1
    %10 = vsyncpa %s9, 0
    %11 = vsyncpa [#allocation6], 0
    %12 = vsyncpa [#allocation4], 0
    %s13 = scalar_lea.sflag [#allocation4], 1
    %14 = vsyncpa %s13, 0
    loop: start=0, step=1, limit=4
    $region2: #{tpu_custom_call.1} parent=1 // loop_pre_header
      _
    $region3: #{tpu_custom_call.1} parent=1 // loop_header
      %s16 = sphi 0, %s20
      %p17 = scmp.ge.s32.totalorder %s16, 4
      %s26 = sphi 0, %s28
      %s29 = sphi 0, %s26
      %s30 = sphi 0, %s29
      %s46 = sphi 0, %s30
      %s50 = sphi 0, %s50
      %s52 = sphi 0, %s50
      %s53 = sphi 0, %s52
      %s67 = sphi 0, %s53
      %s71 = sphi 0, %s71
      %s73 = sphi 0, %s71
      %s74 = sphi 0, %s73
      %s88 = sphi 0, %s74
      %s94 = sphi 0, %s96
      %s97 = sphi 0, %s94
      %s98 = sphi 0, %s97
      %s114 = sphi 0, %s98
    $region4: #{tpu_custom_call.1} parent=1 // loop_header_branch
      %19 = sbr.rel (%p17) target = $region8
    $region5: #{tpu_custom_call.1} parent=1 // loop_body
      %s21 = ssub.s32 %s16, 1
      %s22 = ssub.s32 %s16, 2
      %s23 = sadd.s32 %s16, 1
      %s24 = ssub.s32 %s16, %s23
      %p25 = scmp.eq.s32.totalorder %s24, 0
      %s27 = sadd.s32 %s26, 1
      %s28 = scalar_select %p25, %s26, %s27
      %p31 = pneg %p25
      %p32 = scmp.eq.s32.totalorder %s16, 1
      %p33 = por %p31, %p32
      %p34 = scmp.ne.s32.totalorder %s26, %s29
      %p35 = scmp.eq.s32.totalorder %s16, 0
      %p36 = por %p34, %p35
      %p37 = scmp.ne.s32.totalorder %s26, %s29
      %p38 = scmp.eq.s32.totalorder %s21, 1
      %p39 = por %p37, %p38
      %p40 = scmp.ne.s32.totalorder %s29, %s30
      %p41 = scmp.eq.s32.totalorder %s21, 0
      %p42 = por %p40, %p41
      %p43 = scmp.ne.s32.totalorder %s29, %s30
      %p44 = scmp.eq.s32.totalorder %s22, 1
      %p45 = por %p43, %p44
      %p47 = scmp.ne.s32.totalorder %s30, %s46
      %p48 = scmp.eq.s32.totalorder %s22, 0
      %p49 = por %p47, %p48
      %s51 = sadd.s32 %s50, 1
      %p54 = scmp.eq.s32.totalorder %s16, 1
      %p55 = scmp.ne.s32.totalorder %s50, %s52
      %p56 = scmp.eq.s32.totalorder %s16, 0
      %p57 = por %p55, %p56
      %p58 = scmp.ne.s32.totalorder %s50, %s52
      %p59 = scmp.eq.s32.totalorder %s21, 1
      %p60 = por %p58, %p59
      %p61 = scmp.ne.s32.totalorder %s52, %s53
      %p62 = scmp.eq.s32.totalorder %s21, 0
      %p63 = por %p61, %p62
      %p64 = scmp.ne.s32.totalorder %s52, %s53
      %p65 = scmp.eq.s32.totalorder %s22, 1
      %p66 = por %p64, %p65
      %p68 = scmp.ne.s32.totalorder %s53, %s67
      %p69 = scmp.eq.s32.totalorder %s22, 0
      %p70 = por %p68, %p69
      %s72 = sadd.s32 %s71, 1
      %p75 = scmp.eq.s32.totalorder %s16, 1
      %p76 = scmp.ne.s32.totalorder %s71, %s73
      %p77 = scmp.eq.s32.totalorder %s16, 0
      %p78 = por %p76, %p77
      %p79 = scmp.ne.s32.totalorder %s71, %s73
      %p80 = scmp.eq.s32.totalorder %s21, 1
      %p81 = por %p79, %p80
      %p82 = scmp.ne.s32.totalorder %s73, %s74
      %p83 = scmp.eq.s32.totalorder %s21, 0
      %p84 = por %p82, %p83
      %p85 = scmp.ne.s32.totalorder %s73, %s74
      %p86 = scmp.eq.s32.totalorder %s22, 1
      %p87 = por %p85, %p86
      %p89 = scmp.ne.s32.totalorder %s74, %s88
      %p90 = scmp.eq.s32.totalorder %s22, 0
      %p91 = por %p89, %p90
      %s92 = ssub.s32 %s16, %s23
      %p93 = scmp.eq.s32.totalorder %s92, 0
      %s95 = sadd.s32 %s94, 1
      %s96 = scalar_select %p93, %s94, %s95
      %p99 = pneg %p93
      %p100 = scmp.eq.s32.totalorder %s16, 1
      %p101 = por %p99, %p100
      %p102 = scmp.ne.s32.totalorder %s94, %s97
      %p103 = scmp.eq.s32.totalorder %s16, 0
      %p104 = por %p102, %p103
      %p105 = scmp.ne.s32.totalorder %s94, %s97
      %p106 = scmp.eq.s32.totalorder %s21, 1
      %p107 = por %p105, %p106
      %p108 = scmp.ne.s32.totalorder %s97, %s98
      %p109 = scmp.eq.s32.totalorder %s21, 0
      %p110 = por %p108, %p109
      %p111 = scmp.ne.s32.totalorder %s97, %s98
      %p112 = scmp.eq.s32.totalorder %s22, 1
      %p113 = por %p111, %p112
      %p115 = scmp.ne.s32.totalorder %s98, %s114
      %p116 = scmp.eq.s32.totalorder %s22, 0
      %p117 = por %p115, %p116
      %p118 = scmp.le.s32.totalorder 1, %s16
      %p119 = scmp.lt.s32.totalorder %s16, 3
      %p120 = pnand %p118, %p119
      %p121 = pneg %p120
      // Predicated region
      $region9: #{tpu_custom_call.1} parent=5 // pred_check
        _
      $region10: #{tpu_custom_call.1} parent=5 // pred_check_branch
        %123 = sbr.rel (%p120) target = $region12
      $region11: #{tpu_custom_call.1} parent=5 // pred_region
        %s124 = ssub.s32 %s16, 1
        // Predicated region
        $region13: #{tpu_custom_call.1} parent=11 // pred_check
          %p125 = pneg %p63
        $region14: #{tpu_custom_call.1} parent=11 // pred_check_branch
          %127 = sbr.rel (%p125) target = $region16
        $region15: #{tpu_custom_call.1} parent=11 // pred_region
          %s129 = ssub.s32 1024, 1024
          %130 = vsyncadd [#allocation6], %s129
          %s131 = sshll.u32 [#allocation5], 4
          %s132 = int_to_ptr.vmem [resolvable:$true] %s131
          %137 = dma.hbm_to_vmem [thread:$0]  %s1, 1024, %s132, [#allocation6], 128, 128, 8
        $region16: #{tpu_custom_call.1} parent=11 // pred_fallthru
          _
        // Predicated region
        $region17: #{tpu_custom_call.1} parent=11 // pred_check
          %p138 = pneg %p84
        $region18: #{tpu_custom_call.1} parent=11 // pred_check_branch
          %140 = sbr.rel (%p138) target = $region20
        $region19: #{tpu_custom_call.1} parent=11 // pred_region
          _
        $region20: #{tpu_custom_call.1} parent=11 // pred_fallthru
          _
      $region12: #{tpu_custom_call.1} parent=5 // pred_fallthru
        _
      %p141 = scmp.lt.s32.totalorder %s16, 2
      // Predicated region
      $region21: #{tpu_custom_call.1} parent=5 // pred_check
        %p142 = pneg %p141
      $region22: #{tpu_custom_call.1} parent=5 // pred_check_branch
        %144 = sbr.rel (%p142) target = $region24
      $region23: #{tpu_custom_call.1} parent=5 // pred_region
        // Predicated region
        $region25: #{tpu_custom_call.1} parent=23 // pred_check
          %p145 = pneg %p36
        $region26: #{tpu_custom_call.1} parent=23 // pred_check_branch
          %147 = sbr.rel (%p145) target = $region28
        $region27: #{tpu_custom_call.1} parent=23 // pred_region
          %s148 = sand.u32 %s26, 1
          %s149 = scalar_lea.sflag [#allocation3], %s148
          %s150 = sand.u32 %s26, 1
          %s151 = smul.addr %s150, 8
          %s152 = scalar_lea.vmem [#allocation2], %s151
          %s154 = ssub.s32 128, 128
          %155 = vsyncadd %s149, %s154
          %s156 = smul.addr %s16, 128
          %s157 = scalar_lea.hbm %s0, %s156
          %s159 = sshll.u32 %s152, 4
          %s160 = int_to_ptr.vmem [resolvable:$true] %s159
          %162 = dma.hbm_to_vmem [thread:$0]  %s157, 128, %s160, %s149
        $region28: #{tpu_custom_call.1} parent=23 // pred_fallthru
          _
      $region24: #{tpu_custom_call.1} parent=5 // pred_fallthru
        _
      %p163 = scmp.le.s32.totalorder 1, %s16
      %p164 = scmp.lt.s32.totalorder %s16, 3
      %p165 = pnand %p163, %p164
      %p166 = pneg %p165
      // Predicated region
      $region29: #{tpu_custom_call.1} parent=5 // pred_check
        _
      $region30: #{tpu_custom_call.1} parent=5 // pred_check_branch
        %168 = sbr.rel (%p165) target = $region32
      $region31: #{tpu_custom_call.1} parent=5 // pred_region
        %s169 = ssub.s32 %s16, 1
        %s170 = sand.u32 %s29, 1
        %s171 = scalar_lea.sflag [#allocation3], %s170
        %s172 = sand.u32 %s29, 1
        %s173 = smul.addr %s172, 8
        %s174 = scalar_lea.vmem [#allocation2], %s173
        // Predicated region
        $region33: #{tpu_custom_call.1} parent=31 // pred_check
          %p175 = pneg %p42
        $region34: #{tpu_custom_call.1} parent=31 // pred_check_branch
          %177 = sbr.rel (%p175) target = $region36
        $region35: #{tpu_custom_call.1} parent=31 // pred_region
          %178 = dma.done %s171, 128
        $region36: #{tpu_custom_call.1} parent=31 // pred_fallthru
          _
        // Predicated region
        $region37: #{tpu_custom_call.1} parent=31 // pred_check
          %p179 = pneg %p63
        $region38: #{tpu_custom_call.1} parent=31 // pred_check_branch
          %181 = sbr.rel (%p179) target = $region40
        $region39: #{tpu_custom_call.1} parent=31 // pred_region
          %182 = dma.done [#allocation6], 1024
        $region40: #{tpu_custom_call.1} parent=31 // pred_fallthru
          _
        %s183 = sand.u32 %s29, 1
        %s184 = scalar_lea.sflag [#allocation3], %s183
        %s185 = sand.u32 %s29, 1
        %s186 = smul.addr %s185, 8
        %s187 = scalar_lea.vmem [#allocation2], %s186
        %p188 = pneg %p42
        %p189 = pneg %p39
        %p190 = pneg %p63
        %p191 = pneg %p60
        %p192 = pneg %p84
        %p193 = pneg %p81
        %p194 = pneg %p110
        %p195 = pneg %p107
        %s196 = sand.u32 %s97, 1
        %s197 = scalar_lea.sflag [#allocation4], %s196
        %s198 = sand.u32 %s97, 1
        %s199 = smul.addr %s198, 8
        %s200 = scalar_lea.vmem [#allocation7], %s199
        %v201 = vld [vmem:[%s174] sm:$0xff]
        %v202 = vld [vmem:[#allocation5] sm:$0xff]
        %v203 = vld [vmem:[#allocation5 + $0x8] sm:$0xff]
        %v204 = vld [vmem:[#allocation5 + $0x10] sm:$0xff]
        %v205 = vld [vmem:[#allocation5 + $0x18] sm:$0xff]
        %v206 = vld [vmem:[#allocation5 + $0x20] sm:$0xff]
        %v207 = vld [vmem:[#allocation5 + $0x28] sm:$0xff]
        %v208 = vld [vmem:[#allocation5 + $0x30] sm:$0xff]
        %v209 = vld [vmem:[#allocation5 + $0x38] sm:$0xff]
        %v210 = vld [vmem:[%s2] sm:$0x1]
        %v212 = vlaneseq
        %v213 = vshrl.u32 %v212, 7
        %v214 = vsub.s32 0, %v213
        %v215 = vrot.slane %v210, %v214
        %vm217 = vcmask 523264
        %v219 = vsel %vm217, %v201, 0
        %221 = vmatprep.subr.mxu0 0.0
        %222 = vmatpush1.msra.mxu0 0.0
        %223 = vmatprep.subr.mxu0 0.0
        %224 = vmatpush1.msra.mxu0 0.0
        %225 = vmatprep.subr.mxu0 0.0
        %226 = vmatpush1.msra.mxu0 0.0
        %227 = vmatprep.subr.mxu0 0.0
        %228 = vmatpush1.msra.mxu0 0.0
        %229 = vmatprep.subr.mxu0 0.0
        %230 = vmatpush1.msra.mxu0 0.0
        %231 = vmatprep.subr.mxu0 0.0
        %232 = vmatpush1.msra.mxu0 0.0
        %233 = vmatprep.subr.mxu0 0.0
        %234 = vmatpush1.msra.mxu0 0.0
        %235 = vmatprep.subr.mxu0 0.0
        %236 = vmatpush1.msra.mxu0 0.0
        %237 = vmatprep.subr.mxu0 0.0
        %238 = vmatpush1.msra.mxu0 %v209
        %239 = vmatprep.subr.mxu0 0.0
        %240 = vmatpush1.msra.mxu0 %v208
        %241 = vmatprep.subr.mxu0 0.0
        %242 = vmatpush1.msra.mxu0 %v207
        %243 = vmatprep.subr.mxu0 0.0
        %244 = vmatpush1.msra.mxu0 %v206
        %245 = vmatprep.subr.mxu0 0.0
        %246 = vmatpush1.msra.mxu0 %v205
        %247 = vmatprep.subr.mxu0 0.0
        %248 = vmatpush1.msra.mxu0 %v204
        %249 = vmatprep.subr.mxu0 0.0
        %250 = vmatpush1.msra.mxu0 %v203
        %251 = vmatprep.subr.mxu0 0.0
        %252 = vmatpush1.msra.mxu0 %v202
        %253 = vmatprep.subr.mxu0 0.0
        %254 = vmatpush2.msra.mxu0 0.0
        %255 = vmatprep.subr.mxu0 0.0
        %256 = vmatpush2.msra.mxu0 0.0
        %257 = vmatprep.subr.mxu0 0.0
        %258 = vmatpush2.msra.mxu0 0.0
        %259 = vmatprep.subr.mxu0 0.0
        %260 = vmatpush2.msra.mxu0 0.0
        %261 = vmatprep.subr.mxu0 0.0
        %262 = vmatpush2.msra.mxu0 0.0
        %263 = vmatprep.subr.mxu0 0.0
        %264 = vmatpush2.msra.mxu0 0.0
        %265 = vmatprep.subr.mxu0 0.0
        %266 = vmatpush2.msra.mxu0 0.0
        %267 = vmatprep.subr.mxu0 0.0
        %268 = vmatpush2.msra.mxu0 0.0
        %269 = vmatprep.subr.mxu0 0.0
        %270 = vmatpush2.msra.mxu0 0.0
        %271 = vmatprep.subr.mxu0 0.0
        %272 = vmatpush2.msra.mxu0 0.0
        %273 = vmatprep.subr.mxu0 0.0
        %274 = vmatpush2.msra.mxu0 0.0
        %275 = vmatprep.subr.mxu0 0.0
        %276 = vmatpush2.msra.mxu0 0.0
        %277 = vmatprep.subr.mxu0 0.0
        %278 = vmatpush2.msra.mxu0 0.0
        %279 = vmatprep.subr.mxu0 0.0
        %280 = vmatpush2.msra.mxu0 0.0
        %281 = vmatprep.subr.mxu0 0.0
        %282 = vmatpush2.msra.mxu0 0.0
        %283 = vmatprep.subr.mxu0 0.0
        %284 = vmatpush2.msra.mxu0 0.0
        %285 = vmatprep.mubr.f32.mxu0 0.0
        %286 = vmatmul.mubr.f32.gmra.mxu0 %v219
        %v287 = vpop.f32.mrf.mxu0
        %v288 = vadd.f32 %v215, %v287
        %v289 = vpop.f32.mrf.mxu0
        %290 = vdwg.mxu0
        %v291 = vmax.f32 %v288, 0.0
        %292 = vst [vmem:[%s200] sm:$0xff] %v291
        %s293 = sand.u32 %s97, 1
        %s294 = scalar_lea.sflag [#allocation4], %s293
        %s295 = sand.u32 %s97, 1
        %s296 = smul.addr %s295, 8
        %s297 = scalar_lea.vmem [#allocation7], %s296
        // Predicated region
        $region41: #{tpu_custom_call.1} parent=31 // pred_check
          %p298 = pneg %p107
        $region42: #{tpu_custom_call.1} parent=31 // pred_check_branch
          %300 = sbr.rel (%p298) target = $region44
        $region43: #{tpu_custom_call.1} parent=31 // pred_region
          %s302 = ssub.s32 128, 128
          %303 = vsyncadd %s294, %s302
          %s304 = smul.addr %s21, 128
          %s305 = scalar_lea.hbm %s3, %s304
          %s307 = sshll.u32 %s297, 4
          %s308 = int_to_ptr.vmem [resolvable:$true] %s307
          %310 = dma.vmem_to_hbm [thread:$0]  %s308, 128, %s305, %s294
        $region44: #{tpu_custom_call.1} parent=31 // pred_fallthru
          _
      $region32: #{tpu_custom_call.1} parent=5 // pred_fallthru
        _
      %p311 = scmp.le.s32.totalorder 2, %s16
      // Predicated region
      $region45: #{tpu_custom_call.1} parent=5 // pred_check
        %p312 = pneg %p311
      $region46: #{tpu_custom_call.1} parent=5 // pred_check_branch
        %314 = sbr.rel (%p312) target = $region48
      $region47: #{tpu_custom_call.1} parent=5 // pred_region
        %s315 = ssub.s32 %s16, 2
        // Predicated region
        $region49: #{tpu_custom_call.1} parent=47 // pred_check
          %p316 = pneg %p113
        $region50: #{tpu_custom_call.1} parent=47 // pred_check_branch
          %318 = sbr.rel (%p316) target = $region52
        $region51: #{tpu_custom_call.1} parent=47 // pred_region
          %s319 = sand.u32 %s98, 1
          %s320 = scalar_lea.sflag [#allocation4], %s319
          %s321 = sand.u32 %s98, 1
          %s322 = smul.addr %s321, 8
          %s323 = scalar_lea.vmem [#allocation7], %s322
          %324 = dma.done %s320, 128
        $region52: #{tpu_custom_call.1} parent=47 // pred_fallthru
          _
      $region48: #{tpu_custom_call.1} parent=5 // pred_fallthru
        _
    $region6: #{tpu_custom_call.1} parent=1 // loop_footer
      %s20 = sadd.s32 1, %s16
    $region7: #{tpu_custom_call.1} parent=1 // loop_footer_branch
      %15 = sbr.rel target = $region3
    $region8: #{tpu_custom_call.1} parent=1 // loop_exit
      _
    %325 = vsyncpa [#allocation3], 1
    %s326 = scalar_lea.sflag [#allocation3], 1
    %327 = vsyncpa %s326, 1
    %328 = vsyncpa [#allocation6], 1
    %329 = vsyncpa [#allocation4], 1
    %s330 = scalar_lea.sflag [#allocation4], 1
    %331 = vsyncpa %s330, 1

</llo_original>
